<compile_context>
chip_gen: v7x
topology: tpu7x:2x2x1
jax: 0.10.0
libtpu: 0.0.40
codegen_flags: <defaults>
</compile_context>

<pallas_src>
import functools
import math

import jax
import jax.numpy as jnp
from jax.experimental import pallas as pl
from jax.experimental.pallas import tpu as pltpu


def _nested_dropout_kernel(x_ref, b_ref, o_ref, *, feat_dim, rpack, lane_tile,
                           use_mxu):
    """One (bm, bd) tile of: out[n, d] = x[n, d] if d < b_row else 0.

    Packed layout: each kernel row holds `rpack` consecutive logical rows of
    `feat_dim` features; b_ref is (bm, rpack) int32 with the per-logical-row
    cutoffs.  rpack == 1 means no packing (then the lane tile may be a slice of
    the row, offset by pl.program_id(1) * lane_tile).
    """
    x = x_ref[...]
    col = jax.lax.broadcasted_iota(jnp.int32, x.shape, 1)
    if rpack == 1:
        feat = col + pl.program_id(1) * lane_tile      # global feature index
        mask = feat < b_ref[...]                       # (bm, 1) lane-broadcast
    else:
        _, width = x.shape
        # Shifted cutoffs: thresh[n, c] = r*feat_dim + b[n, r], r = c // feat_dim,
        # so the mask is simply  col < thresh.
        r_off = jax.lax.broadcasted_iota(jnp.int32, b_ref.shape, 1) * feat_dim
        b_shift = b_ref[...] + r_off                   # (bm, rpack) int32
        if use_mxu:
            # Lane-expand the (bm, rpack) cutoffs to (bm, width) with a one-hot
            # matmul on the otherwise-idle MXU: O(1) VPU ops per element, so the
            # kernel stays HBM-bound even for tiny feat_dim (rpack up to 128).
            rr = jax.lax.broadcasted_iota(jnp.int32, (rpack, width), 0)
            cc = jax.lax.broadcasted_iota(jnp.int32, (rpack, width), 1)
            lo = rr * feat_dim
            expand = jnp.where((cc >= lo) & (cc < lo + feat_dim),
                               1.0, 0.0).astype(jnp.float32)   # E[r,c]=[c//D==r]
            thresh_f = jnp.dot(b_shift.astype(jnp.float32), expand,
                               precision=jax.lax.Precision.HIGHEST,
                               preferred_element_type=jnp.float32)
            # Values are small exact integers in f32; +0.5 guards any rounding.
            thresh = (thresh_f + 0.5).astype(jnp.int32)
        else:
            # Tiny tiles / tiny rpack: a short static where-chain is cheap.
            thresh = jnp.zeros(x.shape, jnp.int32)
            for r in range(rpack):
                lo = r * feat_dim
                in_row = (col >= lo) & (col < lo + feat_dim)
                thresh = jnp.where(in_row, b_shift[:, r:r + 1], thresh)
        mask = col < thresh
    o_ref[...] = jnp.where(mask, x, jnp.zeros_like(x))


def _round_up(v, m):
    return -(-v // m) * m


def _choose_tiles(n_rows, width, itemsize):
    """Pick (bm, bd) for the packed (n_rows, width) array."""
    sub = max(8, 32 // itemsize)            # sublane pack: f32 8, bf16 16, int8 32
    tile_bytes = 8 * 1024 * 1024            # target max bytes per x tile
    buf_bytes = 2 * tile_bytes              # x-in + x-out + b, per pipeline buffer
    b_row_bytes = 128 * 4                   # (bm, rpack) int32 b block lane-pads to 128

    # Lane tile: keep the full row (one contiguous HBM DMA per tile) unless even
    # a minimal sublane-aligned tile would blow the budget (absurdly wide rows).
    bd = width
    if width % 128 == 0 and width * itemsize * sub > tile_bytes:
        for cand in range(width - 128, 511, -128):
            if width % cand == 0 and cand * itemsize * sub <= tile_bytes:
                bd = cand
                break

    if n_rows <= sub:
        return n_rows, bd

    # Row tile from the VMEM budget (x-in + x-out + lane-padded b, double-buffered).
    per_row = 2 * bd * itemsize + b_row_bytes
    bm = min(n_rows, max(sub, buf_bytes // per_row))
    bm -= bm % sub
    # Prefer >= 4 row blocks (feeds both v7x TensorCores and gives pipeline
    # overlap), but never shrink tiles below ~512 KiB (per-step overhead).
    rows_512k = -(-(512 * 1024) // (bd * itemsize))
    want = _round_up(max(sub, rows_512k, -(-n_rows // 4)), sub)
    bm = max(sub, min(bm, want))
    return bm, bd


def nested_dropout_uniform(x, key, k_dim, min_fb=1):
    """Pallas equivalent of NestedDropoutUniformLayer.forward.

    Returns (output, b) with output[n, d] = x[n, d] * (d < b[n]) and
    b[n] ~ Uniform{min_fb, ..., k_dim}.  The torch module's boolean noise mask
    is `get_noise(b, k_dim)` (reconstructed lazily from b).
    """
    N, D = x.shape
    if D != k_dim:
        raise ValueError(f"input feature dim {D} != k_dim {k_dim}")
    if not 1 <= min_fb <= k_dim:
        raise ValueError(f"need 1 <= min_fb <= k_dim, got min_fb={min_fb}")

    # Per-row cutoff sampling is tiny scalar glue -> plain JAX.
    # TODO(synk): torch RNG stream not reproduced bit-exactly; distribution matches.
    b = jax.random.randint(key, (N,), min_fb, k_dim + 1, dtype=jnp.int32)

    # Pack consecutive rows so the packed width is a multiple of 128 lanes
    # (lane-dense, unmasked stores) whenever k_dim < 128.
    if D < 128:
        rpack = 128 // math.gcd(D, 128)
        if rpack * D > 1024:          # pathological k_dim; give up on packing
            rpack = 1                 # TODO(synk): sub-128-lane masked stores here.
    else:
        rpack = 1
    width = rpack * D

    pad = (-N) % rpack
    if pad:
        x_w = jnp.pad(x, ((0, pad), (0, 0)))
        b_w = jnp.pad(b, ((0, pad),))
    else:
        x_w, b_w = x, b
    n_rows = (N + pad) // rpack
    x_p = x_w.reshape(n_rows, width)
    b_p = b_w.reshape(n_rows, rpack)

    itemsize = jnp.dtype(x.dtype).itemsize
    bm, bd = _choose_tiles(n_rows, width, itemsize)
    assert rpack == 1 or bd == width, "packed rows are never lane-split"
    grid = (pl.cdiv(n_rows, bm), width // bd)
    use_mxu = rpack >= 4 and bm >= 8

    kernel = functools.partial(_nested_dropout_kernel, feat_dim=D, rpack=rpack,
                               lane_tile=bd, use_mxu=use_mxu)

    out_p = pl.pallas_call(
        kernel,
        out_shape=jax.ShapeDtypeStruct((n_rows, width), x.dtype),
        grid_spec=pltpu.PrefetchScalarGridSpec(
            num_scalar_prefetch=0,
            grid=grid,
            in_specs=[
                pl.BlockSpec((bm, bd), lambda i, j: (i, j)),
                pl.BlockSpec((bm, rpack), lambda i, j: (i, 0)),
            ],
            out_specs=pl.BlockSpec((bm, bd), lambda i, j: (i, j)),
        ),
        compiler_params=pltpu.CompilerParams(
            dimension_semantics=("parallel", "parallel"),
            vmem_limit_bytes=44 * 1024 * 1024,
        ),
    )(x_p, b_p)

    out = out_p.reshape(-1, D)
    if pad:
        out = out[:N]
    return out, b


def get_noise(b, k_dim, dtype=jnp.bool_):
    """NestedDropoutUniformLayer.get_noise(): lazy mask reconstruction."""
    return (jnp.arange(k_dim, dtype=jnp.int32)[None, :] < b[:, None]).astype(dtype)


def _check(x, key, k_dim, label):
    out, b = nested_dropout_uniform(x, key, k_dim)
    out = jax.block_until_ready(out)
    noise = (jnp.arange(k_dim, dtype=jnp.int32)[None, :] < b[:, None]).astype(x.dtype)
    assert out.shape == x.shape, f"shape mismatch ({label})"
    assert jnp.allclose(out, x * noise), f"output mismatch ({label})"
    assert jnp.array_equal(get_noise(b, k_dim), noise.astype(bool)), f"noise mismatch ({label})"
    assert bool(jnp.all((b >= 1) & (b <= k_dim))), f"cutoff out of range ({label})"


if __name__ == "__main__":
    root = jax.random.PRNGKey(0)
    kx1, kn1, kx2, kn2, kx3, kn3 = jax.random.split(root, 6)

    # 1) k_dim < 128 and divides 128 -> packed rows, tiny row tile (where-chain path).
    _check(jax.random.normal(kx1, (8, 32), jnp.float32), kn1, 32, "packed small")

    # 2) k_dim >= 128 -> unpacked, already lane-dense.
    _check(jax.random.normal(kx2, (16, 256), jnp.float32), kn2, 256, "unpacked")

    # 3) k_dim < 128, does NOT divide 128, ragged batch -> generalized packing
    #    (rpack=16, width=384), row padding, MXU lane-expansion, partial blocks.
    _check(jax.random.normal(kx3, (130, 24), jnp.float32), kn3, 24, "packed ragged")

    print("KERNEL_OK")
</pallas_src>

<mosaic_0001>
module attributes {stable_mosaic.version = 11 : i64} {
  func.func @_nested_dropout_kernel(%arg0: i32, %arg1: i32, %arg2: memref<2x128xf32, #tpu.memory_space<vmem>>, %arg3: memref<2x4xi32, #tpu.memory_space<vmem>>, %arg4: memref<2x128xf32, #tpu.memory_space<vmem>>) attributes {dimension_semantics = [#tpu.dimension_semantics<parallel>, #tpu.dimension_semantics<parallel>], iteration_bounds = array<i64: 1, 1>, scalar_prefetch = 0 : i64, scratch_operands = 0 : i64, tpu.core_type = #tpu.core_type<tc>, window_params = [{transform_indices = @transform_0, window_bounds = array<i64: 2, 128>}, {transform_indices = @transform_1, window_bounds = array<i64: 2, 4>}, {transform_indices = @transform_2, window_bounds = array<i64: 2, 128>}]} {
    %c0 = arith.constant 0 : index
    %c0_0 = arith.constant 0 : index
    %0 = vector.load %arg2[%c0, %c0_0] : memref<2x128xf32, #tpu.memory_space<vmem>>, vector<2x128xf32>
    %1 = tpu.iota {dimensions = array<i32: 1>} : vector<2x128xi32>
    %2 = tpu.iota {dimensions = array<i32: 1>} : vector<2x4xi32>
    %c32_i32 = arith.constant 32 : i32
    %3 = vector.broadcast %c32_i32 : i32 to vector<2x4xi32>
    %4 = arith.muli %2, %3 : vector<2x4xi32>
    %c0_1 = arith.constant 0 : index
    %c0_2 = arith.constant 0 : index
    %5 = vector.load %arg3[%c0_1, %c0_2] : memref<2x4xi32, #tpu.memory_space<vmem>>, vector<2x4xi32>
    %6 = arith.addi %5, %4 : vector<2x4xi32>
    %c0_i32 = arith.constant 0 : i32
    %7 = vector.broadcast %c0_i32 : i32 to vector<2x128xi32>
    %c0_i32_3 = arith.constant 0 : i32
    %8 = vector.broadcast %c0_i32_3 : i32 to vector<2x128xi32>
    %9 = arith.cmpi sge, %1, %8 : vector<2x128xi32>
    %c32_i32_4 = arith.constant 32 : i32
    %10 = vector.broadcast %c32_i32_4 : i32 to vector<2x128xi32>
    %11 = arith.cmpi slt, %1, %10 : vector<2x128xi32>
    %12 = arith.andi %9, %11 : vector<2x128xi1>
    %13 = vector.extract_strided_slice %6 {offsets = [0, 0], sizes = [2, 1], strides = [1, 1]} : vector<2x4xi32> to vector<2x1xi32>
    %14 = vector.shape_cast %13 : vector<2x1xi32> to vector<2x1xi32>
    %15 = vector.broadcast %14 : vector<2x1xi32> to vector<2x128xi32>
    %16 = arith.select %12, %15, %7 : vector<2x128xi1>, vector<2x128xi32>
    %c32_i32_5 = arith.constant 32 : i32
    %17 = vector.broadcast %c32_i32_5 : i32 to vector<2x128xi32>
    %18 = arith.cmpi sge, %1, %17 : vector<2x128xi32>
    %c64_i32 = arith.constant 64 : i32
    %19 = vector.broadcast %c64_i32 : i32 to vector<2x128xi32>
    %20 = arith.cmpi slt, %1, %19 : vector<2x128xi32>
    %21 = arith.andi %18, %20 : vector<2x128xi1>
    %22 = vector.extract_strided_slice %6 {offsets = [0, 1], sizes = [2, 1], strides = [1, 1]} : vector<2x4xi32> to vector<2x1xi32>
    %23 = vector.shape_cast %22 : vector<2x1xi32> to vector<2x1xi32>
    %24 = vector.broadcast %23 : vector<2x1xi32> to vector<2x128xi32>
    %25 = arith.select %21, %24, %16 : vector<2x128xi1>, vector<2x128xi32>
    %c64_i32_6 = arith.constant 64 : i32
    %26 = vector.broadcast %c64_i32_6 : i32 to vector<2x128xi32>
    %27 = arith.cmpi sge, %1, %26 : vector<2x128xi32>
    %c96_i32 = arith.constant 96 : i32
    %28 = vector.broadcast %c96_i32 : i32 to vector<2x128xi32>
    %29 = arith.cmpi slt, %1, %28 : vector<2x128xi32>
    %30 = arith.andi %27, %29 : vector<2x128xi1>
    %31 = vector.extract_strided_slice %6 {offsets = [0, 2], sizes = [2, 1], strides = [1, 1]} : vector<2x4xi32> to vector<2x1xi32>
    %32 = vector.shape_cast %31 : vector<2x1xi32> to vector<2x1xi32>
    %33 = vector.broadcast %32 : vector<2x1xi32> to vector<2x128xi32>
    %34 = arith.select %30, %33, %25 : vector<2x128xi1>, vector<2x128xi32>
    %c96_i32_7 = arith.constant 96 : i32
    %35 = vector.broadcast %c96_i32_7 : i32 to vector<2x128xi32>
    %36 = arith.cmpi sge, %1, %35 : vector<2x128xi32>
    %c128_i32 = arith.constant 128 : i32
    %37 = vector.broadcast %c128_i32 : i32 to vector<2x128xi32>
    %38 = arith.cmpi slt, %1, %37 : vector<2x128xi32>
    %39 = arith.andi %36, %38 : vector<2x128xi1>
    %40 = vector.extract_strided_slice %6 {offsets = [0, 3], sizes = [2, 1], strides = [1, 1]} : vector<2x4xi32> to vector<2x1xi32>
    %41 = vector.shape_cast %40 : vector<2x1xi32> to vector<2x1xi32>
    %42 = vector.broadcast %41 : vector<2x1xi32> to vector<2x128xi32>
    %43 = arith.select %39, %42, %34 : vector<2x128xi1>, vector<2x128xi32>
    %44 = arith.cmpi slt, %1, %43 : vector<2x128xi32>
    %cst = arith.constant 0.000000e+00 : f32
    %45 = vector.broadcast %cst : f32 to vector<2x128xf32>
    %46 = arith.select %44, %0, %45 : vector<2x128xi1>, vector<2x128xf32>
    %c0_8 = arith.constant 0 : index
    %c0_9 = arith.constant 0 : index
    %47 = vector.load %arg4[%c0_8, %c0_9] : memref<2x128xf32, #tpu.memory_space<vmem>>, vector<2x128xf32>
    tpu.vector_store %arg4[%c0_8, %c0_9], %46 {strides = array<i32>} : memref<2x128xf32, #tpu.memory_space<vmem>>, vector<2x128xf32>,
    return
  }
  func.func @transform_0(%arg0: i32, %arg1: i32) -> (i32, i32) {
    %c0_i32 = arith.constant 0 : i32
    return %arg0, %arg1 : i32, i32
  }
  func.func @transform_1(%arg0: i32, %arg1: i32) -> (i32, i32) {
    %c0_i32 = arith.constant 0 : i32
    %c0_i32_0 = arith.constant 0 : i32
    return %arg0, %c0_i32 : i32, i32
  }
  func.func @transform_2(%arg0: i32, %arg1: i32) -> (i32, i32) {
    %c0_i32 = arith.constant 0 : i32
    return %arg0, %arg1 : i32, i32
  }
}

</mosaic_0001>

<llo_original>
// kernel: tpu_custom_call.1
$region0: #{tpu_custom_call.1}
  #allocation0 [shape = 'u32[]', space=smem, size = 0x4, offset = 0x4, fixed_abs, tag = 'smem constant byte address 0x4 - core index']
  #allocation1 [shape = 'u32[144,128]{1,0:T(1,128)}', space=vmem, size = 0x12000, scoped, tag = 'internal scratch']
  %s0 = inlined_call_operand.hbm [shape: f32[2,128], index: 0, kind: input, shape index: {}]
  %s1 = inlined_call_operand.vmem [shape: s32[2,4], index: 1, kind: input, shape index: {}]
  %s2 = inlined_call_operand.hbm [shape: f32[2,128], index: 2, kind: output, shape index: {}]
  %s3 = sld [smem:[#allocation0]]
  $region22: #{tpu_custom_call.1} parent=0
    _
  %s5 = ssub.s32 1, %s3
  %s6 = scalar_select 0, %s5, %s3
  $region1: #{tpu_custom_call.1} parent=0
    #allocation2 [shape = 'u8[1024]{0}', space=vmem, size = 0x400, scoped, tag = 'input window, operand 0, single buffered']
    #allocation3 [shape = 's32[1]{0}', space=sflag, size = 0x4, scoped, tag = 'scoped memory for tpu_custom_call.1']
    #allocation4 [shape = 's32[1]{0}', space=sflag, size = 0x4, scoped, tag = 'scoped memory for tpu_custom_call.1']
    #allocation5 [shape = 'u8[1024]{0}', space=vmem, size = 0x400, scoped, tag = 'output window, operand 0, single buffered']
    %7 = vsyncpa [#allocation3], 0
    %8 = vsyncpa [#allocation4], 0
    // Predicated region
    $region2: #{tpu_custom_call.1} parent=1 // pred_check
      _
    $region3: #{tpu_custom_call.1} parent=1 // pred_check_branch
      %10 = sbr.rel (0) target = $region5
    $region4: #{tpu_custom_call.1} parent=1 // pred_region
      %s12 = ssub.s32 32, 32
      %13 = vsyncadd [#allocation3], %s12
      %s15 = sshll.u32 [#allocation2], 4
      %s16 = int_to_ptr.vmem [resolvable:$true] %s15
      %18 = dma.hbm_to_vmem [thread:$0]  %s0, 32, %s16, [#allocation3]
    $region5: #{tpu_custom_call.1} parent=1 // pred_fallthru
      _
    // Predicated region
    $region6: #{tpu_custom_call.1} parent=1 // pred_check
      _
    $region7: #{tpu_custom_call.1} parent=1 // pred_check_branch
      %20 = sbr.rel (0) target = $region9
    $region8: #{tpu_custom_call.1} parent=1 // pred_region
      _
    $region9: #{tpu_custom_call.1} parent=1 // pred_fallthru
      _
    // Predicated region
    $region10: #{tpu_custom_call.1} parent=1 // pred_check
      _
    $region11: #{tpu_custom_call.1} parent=1 // pred_check_branch
      %22 = sbr.rel (0) target = $region13
    $region12: #{tpu_custom_call.1} parent=1 // pred_region
      %23 = dma.done [#allocation3], 32
    $region13: #{tpu_custom_call.1} parent=1 // pred_fallthru
      _
    %v24 = vld [vmem:[#allocation2] sm:$0x3]
    %v25 = vlaneseq
    %v26 = vand.u32 %v25, 127
    %v27 = vmul.u32 %v26, 32
    %v28 = vld [vmem:[%s1] sm:$0x3]
    %v29 = vadd.s32 %v28, %v27
    %vm30 = vcmp.ge.s32.totalorder %v26, 0
    %vm31 = vcmp.lt.s32.totalorder %v26, 32
    %vm32 = vmand %vm30, %vm31
    %33 = vset.pattern.permute.xlu0 0
    %34 = vperm.xlu0 %33, %v29
    %v35 = vpop.permute.xlu0 %34
    %v36 = vsel %vm32, %v35, 0
    %vm37 = vcmp.ge.s32.totalorder %v26, 32
    %vm38 = vcmp.lt.s32.totalorder %v26, 64
    %vm39 = vmand %vm37, %vm38
    %40 = vset.pattern.permute.xlu0 1
    %41 = vperm.xlu0 %40, %v29
    %v42 = vpop.permute.xlu0 %41
    %v43 = vsel %vm39, %v42, %v36
    %vm44 = vcmp.ge.s32.totalorder %v26, 64
    %vm45 = vcmp.lt.s32.totalorder %v26, 96
    %vm46 = vmand %vm44, %vm45
    %47 = vset.pattern.permute.xlu0 2
    %48 = vperm.xlu0 %47, %v29
    %v49 = vpop.permute.xlu0 %48
    %v50 = vsel %vm46, %v49, %v43
    %vm51 = vcmp.ge.s32.totalorder %v26, 96
    %vm52 = vcmp.lt.s32.totalorder %v26, 128
    %vm53 = vmand %vm51, %vm52
    %54 = vset.pattern.permute.xlu0 3
    %55 = vperm.xlu0 %54, %v29
    %v56 = vpop.permute.xlu0 %55
    %v57 = vsel %vm53, %v56, %v50
    %vm58 = vcmp.lt.s32.totalorder %v26, %v57
    %v59 = vsel %vm58, %v24, 0.0
    %60 = vst [vmem:[#allocation5] sm:$0x3] %v59
    // Predicated region
    $region14: #{tpu_custom_call.1} parent=1 // pred_check
      _
    $region15: #{tpu_custom_call.1} parent=1 // pred_check_branch
      %62 = sbr.rel (0) target = $region17
    $region16: #{tpu_custom_call.1} parent=1 // pred_region
      %s64 = ssub.s32 32, 32
      %65 = vsyncadd [#allocation4], %s64
      %s67 = sshll.u32 [#allocation5], 4
      %s68 = int_to_ptr.vmem [resolvable:$true] %s67
      %70 = dma.vmem_to_hbm [thread:$0]  %s68, 32, %s2, [#allocation4]
    $region17: #{tpu_custom_call.1} parent=1 // pred_fallthru
      _
    // Predicated region
    $region18: #{tpu_custom_call.1} parent=1 // pred_check
      _
    $region19: #{tpu_custom_call.1} parent=1 // pred_check_branch
      %72 = sbr.rel (0) target = $region21
    $region20: #{tpu_custom_call.1} parent=1 // pred_region
      %73 = dma.done [#allocation4], 32
    $region21: #{tpu_custom_call.1} parent=1 // pred_fallthru
      _
    %74 = vsyncpa [#allocation3], 1
    %75 = vsyncpa [#allocation4], 1

</llo_original>
